<compile_context>
chip_gen: v7x
topology: tpu7x:2x2x1
jax: 0.10.0
libtpu: 0.0.40
codegen_flags: <defaults>
</compile_context>

<pallas_src>
import functools

import jax
import jax.numpy as jnp
from jax.experimental import pallas as pl
from jax.experimental.pallas import tpu as pltpu


_INV_TEMPERATURE = 1.0 / 0.07  # matches the hard-coded /0.07 in the PyTorch forward


# --------------------------------------------------------------------------- #
# Kernel body
# --------------------------------------------------------------------------- #
def _contrastive_loss_kernel(e1_ref, e2_ref, labels_ref, out_ref, *,
                             c_chunk, use_mxu):
    # Tile views:
    #   e1_ref     : (TILE_N, C)     native dtype (f32 or bf16)
    #   e2_ref     : (TILE_N, K, C)  native dtype
    #   labels_ref : (TILE_N, 1)     int32
    #   out_ref    : (TILE_N, 1)     f32 per-sample loss
    tn, k, c = e2_ref.shape

    # Normalize e1 and fold the 1/temperature once into the small (TN, C) tensor.
    e1 = e1_ref[...].astype(jnp.float32)                                   # (TN, C)
    inv_norm = jax.lax.rsqrt(jnp.sum(e1 * e1, axis=-1, keepdims=True))     # (TN, 1)
    e1s = e1 * (inv_norm * jnp.float32(_INV_TEMPERATURE))                  # (TN, C) f32

    n_chunks = c // c_chunk  # c_chunk always divides c (see _pick_c_chunk)
    s = jnp.zeros((tn, k), jnp.float32)

    if use_mxu:
        # d via the MXU: native-dtype operands, f32 accumulation, no
        # (TN, K, C) f32 temporary and half the XLU cross-lane reduces.
        d = jnp.einsum(
            'nic,nkc->nik',
            e1s.astype(e2_ref.dtype)[:, None, :], e2_ref[...],
            preferred_element_type=jnp.float32)[:, 0, :]                   # (TN, K)
        # s = sum_c e2^2 accumulated in f32 over bounded C-chunks (keeps the
        # live f32 working set small so large tiles never spill vregs).
        for ci in range(n_chunks):
            ch = e2_ref[:, :, ci * c_chunk:(ci + 1) * c_chunk].astype(jnp.float32)
            s = s + jnp.sum(ch * ch, axis=-1)
    else:
        # Small C: fused VPU path.  Each loaded chunk feeds both d and s;
        # squares / accumulation stay in f32, no full-tile f32 copy.
        d = jnp.zeros((tn, k), jnp.float32)
        for ci in range(n_chunks):
            ch = e2_ref[:, :, ci * c_chunk:(ci + 1) * c_chunk].astype(jnp.float32)
            e1c = e1s[:, ci * c_chunk:(ci + 1) * c_chunk][:, None, :]      # (TN,1,cc)
            d = d + jnp.sum(e1c * ch, axis=-1)
            s = s + jnp.sum(ch * ch, axis=-1)

    # Fused e2 normalization + temperature.
    logits = d * jax.lax.rsqrt(s)                                          # (TN, K)
    # (+1e-8 per-row constant cancels in softmax CE; omitted.)

    # Softmax cross-entropy with integer labels; label pick fused via where().
    labels = labels_ref[...]                                               # (TN, 1)
    m = jnp.max(logits, axis=-1, keepdims=True)                            # (TN, 1)
    lse = jnp.log(jnp.sum(jnp.exp(logits - m), axis=-1, keepdims=True)) + m
    k_ids = jax.lax.broadcasted_iota(jnp.int32, (tn, k), 1)                # (TN, K)
    picked = jnp.sum(jnp.where(k_ids == labels, logits, 0.0),
                     axis=-1, keepdims=True)                               # (TN, 1)

    out_ref[...] = lse - picked


# --------------------------------------------------------------------------- #
# Sizing heuristics
# --------------------------------------------------------------------------- #
def _vmem_limit_bytes():
    """Scoped-VMEM limit: ~3/4 of physical, capped at 96 MiB.

    -> ~96 MiB on v5e/v6e (128 MiB physical), ~48 MiB on v7x (64 MiB physical).
    Falls back to 48 MiB (safe everywhere) if the hardware query fails.
    """
    try:
        cap = int(pltpu.get_tpu_info().vmem_capacity_bytes)
    except Exception:
        cap = 64 * 1024 * 1024
    return int(min(cap * 3 // 4, 96 * 1024 * 1024))


def _pick_tile_n(n, k, c, itemsize, slab_budget):
    """Rows of e1/e2 processed per grid step.

    `slab_budget` bounds the per-step native-dtype e2+e1 slab; the BlockSpec
    pipeline double-buffers it, and the f32 working set is bounded separately
    (chunked s/d), so 2 x slab + working set fits the scoped-VMEM limit on
    every generation.  The `+ 12*c` term reserves room for the two small f32
    e1 copies held in the kernel.
    """
    bytes_per_row = max(c * (k * itemsize + 12), 1)
    rows = max(8, slab_budget // bytes_per_row)
    # bf16 packs two rows per sublane -> use a 16-multiple; f32 needs 8.
    mult = 16 if itemsize < 4 else 8
    rows = max(mult, (rows // mult) * mult)
    rows = min(rows, 16384)  # sanity cap on the (TILE_N, K) f32 temporaries
    # Guarantee >= 2 grid steps: enables DMA/compute overlap and lets the
    # "parallel" batch axis be split across v7x's two TensorCores.
    if n > mult:
        rows = min(rows, max(mult, ((n // 2) // mult) * mult))
    return min(rows, n)


def _pick_c_chunk(tile_n, k, c, budget_bytes=2 * 1024 * 1024):
    """Chunk of C per f32 square/accumulate step; must divide C."""
    if tile_n * k * c * 4 <= budget_bytes:
        return c
    target = max(128, budget_bytes // max(tile_n * k * 4, 1))
    cc = (min(target, c) // 128) * 128
    while cc >= 128 and c % cc:
        cc -= 128
    return cc if (cc >= 128 and c % cc == 0) else c


# --------------------------------------------------------------------------- #
# Wrapper
# --------------------------------------------------------------------------- #
def contrastive_loss(e1, e2, labels, *, tile_n=None):
    """InfoNCE-style contrastive loss.

    e1: (N, C), e2: (N, K, C) in their native dtype (f32 or bf16),
    labels: (N,) integer class ids in [0, K).  Returns a scalar f32 loss.
    """
    n, c = e1.shape
    n2, k, c2 = e2.shape
    assert n2 == n and c2 == c, "e1/e2 shape mismatch"
    labels2d = labels.astype(jnp.int32).reshape(n, 1)

    itemsize = jnp.dtype(e2.dtype).itemsize
    vmem_limit = _vmem_limit_bytes()
    slab_budget = 16 * 1024 * 1024 if vmem_limit >= 80 * 1024 * 1024 else 12 * 1024 * 1024

    if tile_n is None:
        tile_n = _pick_tile_n(n, k, c, itemsize, slab_budget)
    tile_n = min(tile_n, n)
    grid = (pl.cdiv(n, tile_n),)

    c_chunk = _pick_c_chunk(tile_n, k, c)
    # MXU contraction only pays off when C fills the 128-lane dim; below that
    # the fused VPU path avoids degenerate per-sample (1,C)x(C,K) matmuls.
    use_mxu = c >= 128

    kernel = functools.partial(_contrastive_loss_kernel,
                               c_chunk=c_chunk, use_mxu=use_mxu)

    bytes_accessed = (e1.size * jnp.dtype(e1.dtype).itemsize
                      + e2.size * itemsize
                      + n * 4      # labels
                      + n * 4)     # per-sample output
    cost = pl.CostEstimate(
        flops=5 * n * k * c,          # d (2) + s (2) + normalize/CE (~1)
        transcendentals=2 * n * k,    # exp + rsqrt over the (N, K) plane
        bytes_accessed=int(bytes_accessed),
    )

    per_sample = pl.pallas_call(
        kernel,
        out_shape=jax.ShapeDtypeStruct((n, 1), jnp.float32),
        grid_spec=pltpu.PrefetchScalarGridSpec(
            num_scalar_prefetch=0,
            grid=grid,
            in_specs=[
                pl.BlockSpec((tile_n, c), lambda i: (i, 0)),
                pl.BlockSpec((tile_n, k, c), lambda i: (i, 0, 0)),
                pl.BlockSpec((tile_n, 1), lambda i: (i, 0)),
            ],
            out_specs=pl.BlockSpec((tile_n, 1), lambda i: (i, 0)),
        ),
        compiler_params=pltpu.CompilerParams(
            # Independent per-tile outputs -> batch axis can be split across
            # TensorCores on v7x; harmless on single-TC v5e/v6e.
            dimension_semantics=("parallel",),
            vmem_limit_bytes=vmem_limit,
        ),
        cost_estimate=cost,
    )(e1, e2, labels2d)

    # Tiny (N,) mean reduction left to XLA.
    return jnp.mean(per_sample[:, 0])


# --------------------------------------------------------------------------- #
# Pure-JAX reference and self-test
# --------------------------------------------------------------------------- #
def _reference(e1, e2, labels):
    e1n = e1 / jnp.linalg.norm(e1, axis=-1, keepdims=True)
    e2n = e2 / jnp.linalg.norm(e2, axis=-1, keepdims=True)
    logits = jnp.einsum('nc,nkc->nk', e1n, e2n) / 0.07 + 1e-8
    logp = jax.nn.log_softmax(logits, axis=-1)
    return -jnp.mean(jnp.take_along_axis(logp, labels[:, None], axis=-1))


if __name__ == "__main__":
    # Small deterministic shapes: batch N=16, K=8 candidate keys, C=32 features.
    N, K, C = 16, 8, 32
    key = jax.random.PRNGKey(0)
    k1, k2, k3 = jax.random.split(key, 3)
    e1 = jax.random.normal(k1, (N, C), dtype=jnp.float32)
    e2 = jax.random.normal(k2, (N, K, C), dtype=jnp.float32)
    labels = jax.random.randint(k3, (N,), 0, K, dtype=jnp.int32)

    # Auto tile picker gives tile_n=8 here -> grid of 2 steps, exercising the
    # batch-tiled pipeline (and the >=2-step rule).
    loss = jax.block_until_ready(contrastive_loss(e1, e2, labels))

    ref = _reference(e1, e2, labels)
    assert jnp.allclose(loss, ref, rtol=1e-5, atol=1e-5), (loss, ref)
    print("KERNEL_OK")
</pallas_src>

<mosaic_0001>
module attributes {stable_mosaic.version = 11 : i64} {
  func.func @_contrastive_loss_kernel(%arg0: i32, %arg1: memref<8x32xf32, #tpu.memory_space<vmem>>, %arg2: memref<8x8x32xf32, #tpu.memory_space<vmem>>, %arg3: memref<8x1xi32, #tpu.memory_space<vmem>>, %arg4: memref<8x1xf32, #tpu.memory_space<vmem>>) attributes {dimension_semantics = [#tpu.dimension_semantics<parallel>], iteration_bounds = array<i64: 2>, scalar_prefetch = 0 : i64, scratch_operands = 0 : i64, tpu.core_type = #tpu.core_type<tc>, window_params = [{transform_indices = @transform_0, window_bounds = array<i64: 8, 32>}, {transform_indices = @transform_1, window_bounds = array<i64: 8, 8, 32>}, {transform_indices = @transform_2, window_bounds = array<i64: 8, 1>}, {transform_indices = @transform_3, window_bounds = array<i64: 8, 1>}]} {
    %c0 = arith.constant 0 : index
    %c0_0 = arith.constant 0 : index
    %0 = vector.load %arg1[%c0, %c0_0] : memref<8x32xf32, #tpu.memory_space<vmem>>, vector<8x32xf32>
    %1 = arith.mulf %0, %0 : vector<8x32xf32>
    %cst = arith.constant dense<0.000000e+00> : vector<8xf32>
    %2 = vector.multi_reduction <add>, %1, %cst [1] : vector<8x32xf32> to vector<8xf32>
    %3 = vector.shape_cast %2 : vector<8xf32> to vector<8x1xf32>
    %4 = math.rsqrt %3 : vector<8x1xf32>
    %cst_1 = arith.constant 14.2857141 : f32
    %5 = vector.broadcast %cst_1 : f32 to vector<8x1xf32>
    %6 = arith.mulf %4, %5 : vector<8x1xf32>
    %7 = vector.broadcast %6 : vector<8x1xf32> to vector<8x32xf32>
    %8 = arith.mulf %0, %7 : vector<8x32xf32>
    %cst_2 = arith.constant 0.000000e+00 : f32
    %9 = vector.broadcast %cst_2 : f32 to vector<8x8xf32>
    %cst_3 = arith.constant 0.000000e+00 : f32
    %10 = vector.broadcast %cst_3 : f32 to vector<8x8xf32>
    %c0_4 = arith.constant 0 : index
    %c0_5 = arith.constant 0 : index
    %c0_6 = arith.constant 0 : index
    %11 = vector.load %arg2[%c0_4, %c0_5, %c0_6] : memref<8x8x32xf32, #tpu.memory_space<vmem>>, vector<8x8x32xf32>
    %12 = vector.shape_cast %8 : vector<8x32xf32> to vector<8x1x32xf32>
    %13 = vector.broadcast %12 : vector<8x1x32xf32> to vector<8x8x32xf32>
    %14 = arith.mulf %13, %11 : vector<8x8x32xf32>
    %cst_7 = arith.constant dense<0.000000e+00> : vector<8x8xf32>
    %15 = vector.multi_reduction <add>, %14, %cst_7 [2] : vector<8x8x32xf32> to vector<8x8xf32>
    %16 = arith.addf %10, %15 : vector<8x8xf32>
    %17 = arith.mulf %11, %11 : vector<8x8x32xf32>
    %cst_8 = arith.constant dense<0.000000e+00> : vector<8x8xf32>
    %18 = vector.multi_reduction <add>, %17, %cst_8 [2] : vector<8x8x32xf32> to vector<8x8xf32>
    %19 = arith.addf %9, %18 : vector<8x8xf32>
    %20 = math.rsqrt %19 : vector<8x8xf32>
    %21 = arith.mulf %16, %20 : vector<8x8xf32>
    %c0_9 = arith.constant 0 : index
    %c0_10 = arith.constant 0 : index
    %22 = vector.load %arg3[%c0_9, %c0_10] : memref<8x1xi32, #tpu.memory_space<vmem>>, vector<8x1xi32>
    %cst_11 = arith.constant dense<0xFF800000> : vector<8xf32>
    %23 = vector.multi_reduction <maximumf>, %21, %cst_11 [1] : vector<8x8xf32> to vector<8xf32>
    %24 = vector.shape_cast %23 : vector<8xf32> to vector<8x1xf32>
    %25 = vector.broadcast %24 : vector<8x1xf32> to vector<8x8xf32>
    %26 = arith.subf %21, %25 : vector<8x8xf32>
    %27 = math.exp %26 : vector<8x8xf32>
    %cst_12 = arith.constant dense<0.000000e+00> : vector<8xf32>
    %28 = vector.multi_reduction <add>, %27, %cst_12 [1] : vector<8x8xf32> to vector<8xf32>
    %29 = vector.shape_cast %28 : vector<8xf32> to vector<8x1xf32>
    %30 = math.log %29 : vector<8x1xf32>
    %31 = arith.addf %30, %24 : vector<8x1xf32>
    %32 = tpu.iota {dimensions = array<i32: 1>} : vector<8x8xi32>
    %33 = vector.broadcast %22 : vector<8x1xi32> to vector<8x8xi32>
    %34 = arith.cmpi eq, %32, %33 : vector<8x8xi32>
    %cst_13 = arith.constant 0.000000e+00 : f32
    %35 = vector.broadcast %cst_13 : f32 to vector<8x8xf32>
    %36 = arith.select %34, %21, %35 : vector<8x8xi1>, vector<8x8xf32>
    %cst_14 = arith.constant dense<0.000000e+00> : vector<8xf32>
    %37 = vector.multi_reduction <add>, %36, %cst_14 [1] : vector<8x8xf32> to vector<8xf32>
    %38 = vector.shape_cast %37 : vector<8xf32> to vector<8x1xf32>
    %39 = arith.subf %31, %38 : vector<8x1xf32>
    %c0_15 = arith.constant 0 : index
    %c0_16 = arith.constant 0 : index
    %40 = vector.load %arg4[%c0_15, %c0_16] : memref<8x1xf32, #tpu.memory_space<vmem>>, vector<8x1xf32>
    tpu.vector_store %arg4[%c0_15, %c0_16], %39 {strides = array<i32>} : memref<8x1xf32, #tpu.memory_space<vmem>>, vector<8x1xf32>,
    return
  }
  func.func @transform_0(%arg0: i32) -> (i32, i32) {
    %c0_i32 = arith.constant 0 : i32
    %c0_i32_0 = arith.constant 0 : i32
    return %arg0, %c0_i32 : i32, i32
  }
  func.func @transform_1(%arg0: i32) -> (i32, i32, i32) {
    %c0_i32 = arith.constant 0 : i32
    %c0_i32_0 = arith.constant 0 : i32
    %c0_i32_1 = arith.constant 0 : i32
    return %arg0, %c0_i32, %c0_i32_0 : i32, i32, i32
  }
  func.func @transform_2(%arg0: i32) -> (i32, i32) {
    %c0_i32 = arith.constant 0 : i32
    %c0_i32_0 = arith.constant 0 : i32
    return %arg0, %c0_i32 : i32, i32
  }
  func.func @transform_3(%arg0: i32) -> (i32, i32) {
    %c0_i32 = arith.constant 0 : i32
    %c0_i32_0 = arith.constant 0 : i32
    return %arg0, %c0_i32 : i32, i32
  }
}

</mosaic_0001>

<llo_original>
// kernel: tpu_custom_call.1
$region0: #{tpu_custom_call.1}
  #allocation0 [shape = 'u32[]', space=smem, size = 0x4, offset = 0x4, fixed_abs, tag = 'smem constant byte address 0x4 - core index']
  #allocation1 [shape = 'u32[144,128]{1,0:T(1,128)}', space=vmem, size = 0x12000, scoped, tag = 'internal scratch']
  %s0 = inlined_call_operand.vmem [shape: f32[16,32], index: 0, kind: input, shape index: {}]
  %s1 = inlined_call_operand.hbm [shape: f32[16,8,32], index: 1, kind: input, shape index: {}]
  %s2 = inlined_call_operand.vmem [shape: s32[16,1], index: 2, kind: input, shape index: {}]
  %s3 = inlined_call_operand.vmem [shape: f32[16,1], index: 3, kind: output, shape index: {}]
  %s4 = sld [smem:[#allocation0]]
  $region49: #{tpu_custom_call.1} parent=0
    _
  %s6 = ssub.s32 1, %s4
  %s7 = scalar_select 0, %s6, %s4
  $region1: #{tpu_custom_call.1} parent=0
    #allocation2 [shape = 'u8[65536]{0}', space=vmem, size = 0x10000, scoped, tag = 'input window, operand 1']
    #allocation3 [shape = 's32[2]{0}', space=sflag, size = 0x8, scoped, tag = 'scoped memory for tpu_custom_call.1']
    %8 = vsyncpa [#allocation3], 0
    %s9 = scalar_lea.sflag [#allocation3], 1
    %10 = vsyncpa %s9, 0
    loop: start=0, step=1, limit=4
    $region2: #{tpu_custom_call.1} parent=1 // loop_pre_header
      _
    $region3: #{tpu_custom_call.1} parent=1 // loop_header
      %s12 = sphi 0, %s16
      %p13 = scmp.ge.s32.totalorder %s12, 4
      %s22 = sphi 0, %s24
      %s25 = sphi 0, %s22
      %s26 = sphi 0, %s25
      %s42 = sphi 0, %s26
      %s48 = sphi 0, %s50
      %s51 = sphi 0, %s48
      %s52 = sphi 0, %s51
      %s68 = sphi 0, %s52
      %s74 = sphi 0, %s76
      %s77 = sphi 0, %s74
      %s78 = sphi 0, %s77
      %s94 = sphi 0, %s78
      %s100 = sphi 0, %s102
      %s103 = sphi 0, %s100
      %s104 = sphi 0, %s103
      %s120 = sphi 0, %s104
    $region4: #{tpu_custom_call.1} parent=1 // loop_header_branch
      %15 = sbr.rel (%p13) target = $region8
    $region5: #{tpu_custom_call.1} parent=1 // loop_body
      %s17 = ssub.s32 %s12, 1
      %s18 = ssub.s32 %s12, 2
      %s19 = sadd.s32 %s12, 1
      %s20 = ssub.s32 %s12, %s19
      %p21 = scmp.eq.s32.totalorder %s20, 0
      %s23 = sadd.s32 %s22, 1
      %s24 = scalar_select %p21, %s22, %s23
      %p27 = pneg %p21
      %p28 = scmp.eq.s32.totalorder %s12, 1
      %p29 = por %p27, %p28
      %p30 = scmp.ne.s32.totalorder %s22, %s25
      %p31 = scmp.eq.s32.totalorder %s12, 0
      %p32 = por %p30, %p31
      %p33 = scmp.ne.s32.totalorder %s22, %s25
      %p34 = scmp.eq.s32.totalorder %s17, 1
      %p35 = por %p33, %p34
      %p36 = scmp.ne.s32.totalorder %s25, %s26
      %p37 = scmp.eq.s32.totalorder %s17, 0
      %p38 = por %p36, %p37
      %p39 = scmp.ne.s32.totalorder %s25, %s26
      %p40 = scmp.eq.s32.totalorder %s18, 1
      %p41 = por %p39, %p40
      %p43 = scmp.ne.s32.totalorder %s26, %s42
      %p44 = scmp.eq.s32.totalorder %s18, 0
      %p45 = por %p43, %p44
      %s46 = ssub.s32 %s12, %s19
      %p47 = scmp.eq.s32.totalorder %s46, 0
      %s49 = sadd.s32 %s48, 1
      %s50 = scalar_select %p47, %s48, %s49
      %p53 = pneg %p47
      %p54 = scmp.eq.s32.totalorder %s12, 1
      %p55 = por %p53, %p54
      %p56 = scmp.ne.s32.totalorder %s48, %s51
      %p57 = scmp.eq.s32.totalorder %s12, 0
      %p58 = por %p56, %p57
      %p59 = scmp.ne.s32.totalorder %s48, %s51
      %p60 = scmp.eq.s32.totalorder %s17, 1
      %p61 = por %p59, %p60
      %p62 = scmp.ne.s32.totalorder %s51, %s52
      %p63 = scmp.eq.s32.totalorder %s17, 0
      %p64 = por %p62, %p63
      %p65 = scmp.ne.s32.totalorder %s51, %s52
      %p66 = scmp.eq.s32.totalorder %s18, 1
      %p67 = por %p65, %p66
      %p69 = scmp.ne.s32.totalorder %s52, %s68
      %p70 = scmp.eq.s32.totalorder %s18, 0
      %p71 = por %p69, %p70
      %s72 = ssub.s32 %s12, %s19
      %p73 = scmp.eq.s32.totalorder %s72, 0
      %s75 = sadd.s32 %s74, 1
      %s76 = scalar_select %p73, %s74, %s75
      %p79 = pneg %p73
      %p80 = scmp.eq.s32.totalorder %s12, 1
      %p81 = por %p79, %p80
      %p82 = scmp.ne.s32.totalorder %s74, %s77
      %p83 = scmp.eq.s32.totalorder %s12, 0
      %p84 = por %p82, %p83
      %p85 = scmp.ne.s32.totalorder %s74, %s77
      %p86 = scmp.eq.s32.totalorder %s17, 1
      %p87 = por %p85, %p86
      %p88 = scmp.ne.s32.totalorder %s77, %s78
      %p89 = scmp.eq.s32.totalorder %s17, 0
      %p90 = por %p88, %p89
      %p91 = scmp.ne.s32.totalorder %s77, %s78
      %p92 = scmp.eq.s32.totalorder %s18, 1
      %p93 = por %p91, %p92
      %p95 = scmp.ne.s32.totalorder %s78, %s94
      %p96 = scmp.eq.s32.totalorder %s18, 0
      %p97 = por %p95, %p96
      %s98 = ssub.s32 %s12, %s19
      %p99 = scmp.eq.s32.totalorder %s98, 0
      %s101 = sadd.s32 %s100, 1
      %s102 = scalar_select %p99, %s100, %s101
      %p105 = pneg %p99
      %p106 = scmp.eq.s32.totalorder %s12, 1
      %p107 = por %p105, %p106
      %p108 = scmp.ne.s32.totalorder %s100, %s103
      %p109 = scmp.eq.s32.totalorder %s12, 0
      %p110 = por %p108, %p109
      %p111 = scmp.ne.s32.totalorder %s100, %s103
      %p112 = scmp.eq.s32.totalorder %s17, 1
      %p113 = por %p111, %p112
      %p114 = scmp.ne.s32.totalorder %s103, %s104
      %p115 = scmp.eq.s32.totalorder %s17, 0
      %p116 = por %p114, %p115
      %p117 = scmp.ne.s32.totalorder %s103, %s104
      %p118 = scmp.eq.s32.totalorder %s18, 1
      %p119 = por %p117, %p118
      %p121 = scmp.ne.s32.totalorder %s104, %s120
      %p122 = scmp.eq.s32.totalorder %s18, 0
      %p123 = por %p121, %p122
      %p124 = scmp.le.s32.totalorder 1, %s12
      %p125 = scmp.lt.s32.totalorder %s12, 3
      %p126 = pnand %p124, %p125
      %p127 = pneg %p126
      // Predicated region
      $region9: #{tpu_custom_call.1} parent=5 // pred_check
        _
      $region10: #{tpu_custom_call.1} parent=5 // pred_check_branch
        %129 = sbr.rel (%p126) target = $region12
      $region11: #{tpu_custom_call.1} parent=5 // pred_region
        %s130 = ssub.s32 %s12, 1
      $region12: #{tpu_custom_call.1} parent=5 // pred_fallthru
        _
      %p131 = scmp.lt.s32.totalorder %s12, 2
      // Predicated region
      $region13: #{tpu_custom_call.1} parent=5 // pred_check
        %p132 = pneg %p131
      $region14: #{tpu_custom_call.1} parent=5 // pred_check_branch
        %134 = sbr.rel (%p132) target = $region16
      $region15: #{tpu_custom_call.1} parent=5 // pred_region
        // Predicated region
        $region17: #{tpu_custom_call.1} parent=15 // pred_check
          %p135 = pneg %p32
        $region18: #{tpu_custom_call.1} parent=15 // pred_check_branch
          %137 = sbr.rel (%p135) target = $region20
        $region19: #{tpu_custom_call.1} parent=15 // pred_region
          %p138 = scmp.lt.s32.totalorder %s12, 1
          %s139 = scalar_select %p138, %s12, 1
          %s140 = smul.addr %s139, 8
          %s141 = scalar_lea.vmem %s0, %s140
        $region20: #{tpu_custom_call.1} parent=15 // pred_fallthru
          _
        // Predicated region
        $region21: #{tpu_custom_call.1} parent=15 // pred_check
          %p142 = pneg %p58
        $region22: #{tpu_custom_call.1} parent=15 // pred_check_branch
          %144 = sbr.rel (%p142) target = $region24
        $region23: #{tpu_custom_call.1} parent=15 // pred_region
          %s145 = sand.u32 %s48, 1
          %s146 = scalar_lea.sflag [#allocation3], %s145
          %s147 = sand.u32 %s48, 1
          %s148 = smul.addr %s147, 64
          %s149 = scalar_lea.vmem [#allocation2], %s148
          %s150 = smul.u32 8, %s12
          %s152 = ssub.s32 1024, 1024
          %153 = vsyncadd %s146, %s152
          %s154 = smul.addr %s150, 128
          %s155 = scalar_lea.hbm %s1, %s154
          %s156 = sshll.u32 %s149, 4
          %s157 = int_to_ptr.vmem [resolvable:$true] %s156
          %162 = dma.hbm_to_vmem [thread:$0]  %s155, 1024, %s157, %s146, 128, 128, 8
        $region24: #{tpu_custom_call.1} parent=15 // pred_fallthru
          _
        // Predicated region
        $region25: #{tpu_custom_call.1} parent=15 // pred_check
          %p163 = pneg %p84
        $region26: #{tpu_custom_call.1} parent=15 // pred_check_branch
          %165 = sbr.rel (%p163) target = $region28
        $region27: #{tpu_custom_call.1} parent=15 // pred_region
          %p166 = scmp.lt.s32.totalorder %s12, 1
          %s167 = scalar_select %p166, %s12, 1
          %s168 = smul.addr %s167, 8
          %s169 = scalar_lea.vmem %s2, %s168
        $region28: #{tpu_custom_call.1} parent=15 // pred_fallthru
          _
      $region16: #{tpu_custom_call.1} parent=5 // pred_fallthru
        _
      %p170 = scmp.le.s32.totalorder 1, %s12
      %p171 = scmp.lt.s32.totalorder %s12, 3
      %p172 = pnand %p170, %p171
      %p173 = pneg %p172
      // Predicated region
      $region29: #{tpu_custom_call.1} parent=5 // pred_check
        _
      $region30: #{tpu_custom_call.1} parent=5 // pred_check_branch
        %175 = sbr.rel (%p172) target = $region32
      $region31: #{tpu_custom_call.1} parent=5 // pred_region
        %s176 = ssub.s32 %s12, 1
        %s177 = sand.u32 %s51, 1
        %s178 = scalar_lea.sflag [#allocation3], %s177
        %s179 = sand.u32 %s51, 1
        %s180 = smul.addr %s179, 64
        %s181 = scalar_lea.vmem [#allocation2], %s180
        // Predicated region
        $region33: #{tpu_custom_call.1} parent=31 // pred_check
          %p182 = pneg %p64
        $region34: #{tpu_custom_call.1} parent=31 // pred_check_branch
          %184 = sbr.rel (%p182) target = $region36
        $region35: #{tpu_custom_call.1} parent=31 // pred_region
          %185 = dma.done %s178, 1024
        $region36: #{tpu_custom_call.1} parent=31 // pred_fallthru
          _
        %p186 = scmp.lt.s32.totalorder %s17, 1
        %s187 = scalar_select %p186, %s17, 1
        %s188 = smul.addr %s187, 8
        %s189 = scalar_lea.vmem %s0, %s188
        %p190 = pneg %p38
        %p191 = pneg %p35
        %s192 = sand.u32 %s51, 1
        %s193 = scalar_lea.sflag [#allocation3], %s192
        %s194 = sand.u32 %s51, 1
        %s195 = smul.addr %s194, 64
        %s196 = scalar_lea.vmem [#allocation2], %s195
        %p197 = pneg %p64
        %p198 = pneg %p61
        %p199 = scmp.lt.s32.totalorder %s17, 1
        %s200 = scalar_select %p199, %s17, 1
        %s201 = smul.addr %s200, 8
        %s202 = scalar_lea.vmem %s2, %s201
        %p203 = pneg %p90
        %p204 = pneg %p87
        %p205 = pneg %p116
        %p206 = pneg %p113
        %p207 = scmp.lt.s32.totalorder %s17, 1
        %s208 = scalar_select %p207, %s17, 1
        %s209 = smul.addr %s208, 8
        %s210 = scalar_lea.vmem %s3, %s209
        %p211 = scmp.lt.s32.totalorder %s17, 1
        %s212 = scalar_select %p211, %s17, 1
        %s213 = smul.addr %s212, 8
        %s214 = scalar_lea.vmem %s0, %s213
        %s215 = smul.u32 8, %s17
        %p216 = scmp.lt.s32.totalorder %s17, 1
        %s217 = scalar_select %p216, %s17, 1
        %s218 = smul.addr %s217, 8
        %s219 = scalar_lea.vmem %s2, %s218
        %p220 = scmp.lt.s32.totalorder %s17, 1
        %s221 = scalar_select %p220, %s17, 1
        %s222 = smul.addr %s221, 8
        %s223 = scalar_lea.vmem %s3, %s222
        %v224 = vld [vmem:[%s214] sm:$0xff]
        %v225 = vmul.f32 %v224, %v224
        %vm226 = vcmask 261120
        %v227 = vsel %vm226, %v225, 0.0
        %228 = vadd.xlane.f32.xlu0 %v227
        %v229 = vpop.xlane.xlu0 %228
        %v230 = vrsqrt.pop %v229
        %v231 = vmul.f32 %v230, 14.285714
        %v232 = vmul.f32 %v224, %v231
        %v233 = vld [vmem:[%s181] sm:$0xff]
        %v234 = vld [vmem:[%s181 + $0x8] sm:$0xff]
        %v235 = vld [vmem:[%s181 + $0x10] sm:$0xff]
        %v236 = vld [vmem:[%s181 + $0x18] sm:$0xff]
        %v237 = vld [vmem:[%s181 + $0x20] sm:$0xff]
        %v238 = vld [vmem:[%s181 + $0x28] sm:$0xff]
        %v239 = vld [vmem:[%s181 + $0x30] sm:$0xff]
        %v240 = vld [vmem:[%s181 + $0x38] sm:$0xff]
        %v242 = vcombine.high %v232, %v232
        %v244 = vunpack.c.l.s4 1966171168
        %v245 = vunpack.c.0.s8 %v244
        %v246 = vlaneseq
        %v247 = vshrl.u32 %v246, 7
        %v248 = vsub.s32 %v245, %v247
        %v249 = vrot.slane %v232, %v248
        %v251 = vunpack.c.l.s4 1966171168
        %v252 = vunpack.c.0.s8 %v251
        %v253 = vlaneseq
        %v254 = vshrl.u32 %v253, 7
        %v255 = vsub.s32 %v252, %v254
        %v256 = vrot.slane %v242, %v255
        %v257 = vcombine.high %v249, %v249
        %v258 = vcombine.high %v256, %v256
        %v260 = vunpack.c.l.s4 1966171168
        %v261 = vunpack.c.0.s8 %v260
        %v262 = vlaneseq
        %v263 = vshrl.u32 %v262, 7
        %v264 = vsub.s32 %v261, %v263
        %v265 = vrot.slane %v249, %v264
        %v267 = vunpack.c.l.s4 1966171168
        %v268 = vunpack.c.0.s8 %v267
        %v269 = vlaneseq
        %v270 = vshrl.u32 %v269, 7
        %v271 = vsub.s32 %v268, %v270
        %v272 = vrot.slane %v256, %v271
        %v274 = vunpack.c.l.s4 1966171168
        %v275 = vunpack.c.0.s8 %v274
        %v276 = vlaneseq
        %v277 = vshrl.u32 %v276, 7
        %v278 = vsub.s32 %v275, %v277
        %v279 = vrot.slane %v257, %v278
        %v281 = vunpack.c.l.s4 1966171168
        %v282 = vunpack.c.0.s8 %v281
        %v283 = vlaneseq
        %v284 = vshrl.u32 %v283, 7
        %v285 = vsub.s32 %v282, %v284
        %v286 = vrot.slane %v258, %v285
        %v287 = vcombine.high %v265, %v265
        %v288 = vcombine.high %v272, %v272
        %v289 = vcombine.high %v279, %v279
        %v290 = vcombine.high %v286, %v286
        %v291 = vlaneseq
        %v292 = vshrl.u32 %v291, 7
        %v293 = vsub.s32 0, %v292
        %v294 = vrot.slane %v265, %v293
        %v295 = vlaneseq
        %v296 = vshrl.u32 %v295, 7
        %v297 = vsub.s32 0, %v296
        %v298 = vrot.slane %v279, %v297
        %v299 = vlaneseq
        %v300 = vshrl.u32 %v299, 7
        %v301 = vsub.s32 0, %v300
        %v302 = vrot.slane %v287, %v301
        %v303 = vlaneseq
        %v304 = vshrl.u32 %v303, 7
        %v305 = vsub.s32 0, %v304
        %v306 = vrot.slane %v289, %v305
        %v307 = vlaneseq
        %v308 = vshrl.u32 %v307, 7
        %v309 = vsub.s32 0, %v308
        %v310 = vrot.slane %v272, %v309
        %v311 = vlaneseq
        %v312 = vshrl.u32 %v311, 7
        %v313 = vsub.s32 0, %v312
        %v314 = vrot.slane %v286, %v313
        %v315 = vlaneseq
        %v316 = vshrl.u32 %v315, 7
        %v317 = vsub.s32 0, %v316
        %v318 = vrot.slane %v288, %v317
        %v319 = vlaneseq
        %v320 = vshrl.u32 %v319, 7
        %v321 = vsub.s32 0, %v320
        %v322 = vrot.slane %v290, %v321
        %v331 = vmul.f32 %v294, %v233
        %v332 = vmul.f32 %v298, %v234
        %v333 = vmul.f32 %v302, %v235
        %v334 = vmul.f32 %v306, %v236
        %v335 = vmul.f32 %v310, %v237
        %v336 = vmul.f32 %v314, %v238
        %v337 = vmul.f32 %v318, %v239
        %v338 = vmul.f32 %v322, %v240
        %v339 = vsel %vm226, %v331, 0.0
        %340 = vadd.xlane.f32.xlu0 %v339
        %v341 = vpop.xlane.xlu0 %340
        %v342 = vsel %vm226, %v332, 0.0
        %343 = vadd.xlane.f32.xlu0 %v342
        %v344 = vpop.xlane.xlu0 %343
        %v345 = vsel %vm226, %v333, 0.0
        %346 = vadd.xlane.f32.xlu0 %v345
        %v347 = vpop.xlane.xlu0 %346
        %v348 = vsel %vm226, %v334, 0.0
        %349 = vadd.xlane.f32.xlu0 %v348
        %v350 = vpop.xlane.xlu0 %349
        %v351 = vsel %vm226, %v335, 0.0
        %352 = vadd.xlane.f32.xlu0 %v351
        %v353 = vpop.xlane.xlu0 %352
        %v354 = vsel %vm226, %v336, 0.0
        %355 = vadd.xlane.f32.xlu0 %v354
        %v356 = vpop.xlane.xlu0 %355
        %v357 = vsel %vm226, %v337, 0.0
        %358 = vadd.xlane.f32.xlu0 %v357
        %v359 = vpop.xlane.xlu0 %358
        %v360 = vsel %vm226, %v338, 0.0
        %361 = vadd.xlane.f32.xlu0 %v360
        %v362 = vpop.xlane.xlu0 %361
        %v363 = vadd.f32 %v341, 0.0
        %v364 = vadd.f32 %v344, 0.0
        %v365 = vadd.f32 %v347, 0.0
        %v366 = vadd.f32 %v350, 0.0
        %v367 = vadd.f32 %v353, 0.0
        %v368 = vadd.f32 %v356, 0.0
        %v369 = vadd.f32 %v359, 0.0
        %v370 = vadd.f32 %v362, 0.0
        %v371 = vmul.f32 %v233, %v233
        %v372 = vmul.f32 %v234, %v234
        %v373 = vmul.f32 %v235, %v235
        %v374 = vmul.f32 %v236, %v236
        %v375 = vmul.f32 %v237, %v237
        %v376 = vmul.f32 %v238, %v238
        %v377 = vmul.f32 %v239, %v239
        %v378 = vmul.f32 %v240, %v240
        %v379 = vsel %vm226, %v371, 0.0
        %380 = vadd.xlane.f32.xlu0 %v379
        %v381 = vpop.xlane.xlu0 %380
        %v382 = vsel %vm226, %v372, 0.0
        %383 = vadd.xlane.f32.xlu0 %v382
        %v384 = vpop.xlane.xlu0 %383
        %v385 = vsel %vm226, %v373, 0.0
        %386 = vadd.xlane.f32.xlu0 %v385
        %v387 = vpop.xlane.xlu0 %386
        %v388 = vsel %vm226, %v374, 0.0
        %389 = vadd.xlane.f32.xlu0 %v388
        %v390 = vpop.xlane.xlu0 %389
        %v391 = vsel %vm226, %v375, 0.0
        %392 = vadd.xlane.f32.xlu0 %v391
        %v393 = vpop.xlane.xlu0 %392
        %v394 = vsel %vm226, %v376, 0.0
        %395 = vadd.xlane.f32.xlu0 %v394
        %v396 = vpop.xlane.xlu0 %395
        %v397 = vsel %vm226, %v377, 0.0
        %398 = vadd.xlane.f32.xlu0 %v397
        %v399 = vpop.xlane.xlu0 %398
        %v400 = vsel %vm226, %v378, 0.0
        %401 = vadd.xlane.f32.xlu0 %v400
        %v402 = vpop.xlane.xlu0 %401
        %v403 = vadd.f32 %v381, 0.0
        %v404 = vadd.f32 %v384, 0.0
        %v405 = vadd.f32 %v387, 0.0
        %v406 = vadd.f32 %v390, 0.0
        %v407 = vadd.f32 %v393, 0.0
        %v408 = vadd.f32 %v396, 0.0
        %v409 = vadd.f32 %v399, 0.0
        %v410 = vadd.f32 %v402, 0.0
        %v411 = vrsqrt.pop %v403
        %v412 = vrsqrt.pop %v404
        %v413 = vrsqrt.pop %v405
        %v414 = vrsqrt.pop %v406
        %v415 = vrsqrt.pop %v407
        %v416 = vrsqrt.pop %v408
        %v417 = vrsqrt.pop %v409
        %v418 = vrsqrt.pop %v410
        %v419 = vmul.f32 %v363, %v411
        %v420 = vmul.f32 %v364, %v412
        %v421 = vmul.f32 %v365, %v413
        %v422 = vmul.f32 %v366, %v414
        %v423 = vmul.f32 %v367, %v415
        %v424 = vmul.f32 %v368, %v416
        %v425 = vmul.f32 %v369, %v417
        %v426 = vmul.f32 %v370, %v418
        %v427 = vld [vmem:[%s219] sm:$0xff]
        %v436 = vlaneseq
        %v437 = vand.u32 %v436, 127
        %v438 = vlaneseq
        %v439 = vshrl.u32 %v438, 7
        %v440 = vsub.s32 %v437, %v439
        %v441 = vrot.slane %v419, %v440
        %v442 = vlaneseq
        %v443 = vshrl.u32 %v442, 7
        %v444 = vsub.s32 %v437, %v443
        %v445 = vrot.slane %v420, %v444
        %v446 = vlaneseq
        %v447 = vshrl.u32 %v446, 7
        %v448 = vsub.s32 %v437, %v447
        %v449 = vrot.slane %v421, %v448
        %v450 = vlaneseq
        %v451 = vshrl.u32 %v450, 7
        %v452 = vsub.s32 %v437, %v451
        %v453 = vrot.slane %v422, %v452
        %v454 = vlaneseq
        %v455 = vshrl.u32 %v454, 7
        %v456 = vsub.s32 %v437, %v455
        %v457 = vrot.slane %v423, %v456
        %v458 = vlaneseq
        %v459 = vshrl.u32 %v458, 7
        %v460 = vsub.s32 %v437, %v459
        %v461 = vrot.slane %v424, %v460
        %v462 = vlaneseq
        %v463 = vshrl.u32 %v462, 7
        %v464 = vsub.s32 %v437, %v463
        %v465 = vrot.slane %v425, %v464
        %v466 = vlaneseq
        %v467 = vshrl.u32 %v466, 7
        %v468 = vsub.s32 %v437, %v467
        %v469 = vrot.slane %v426, %v468
        %vm470 = vcmask 1041409
        %v471 = vsel %vm470, %v445, %v441
        %vm472 = vcmask 1042434
        %v473 = vsel %vm472, %v449, %v471
        %vm474 = vcmask 1043459
        %v475 = vsel %vm474, %v453, %v473
        %vm476 = vcmask 1044484
        %v477 = vsel %vm476, %v457, %v475
        %vm478 = vcmask 1045509
        %v479 = vsel %vm478, %v461, %v477
        %vm480 = vcmask 1046534
        %v481 = vsel %vm480, %v465, %v479
        %vm482 = vcmask 1047559
        %v483 = vsel %vm482, %v469, %v481
        %vm485 = vcmask 64512
        %v486 = vsel %vm485, %v483, -inf
        %487 = vmax.xlane.f32.xlu0 %v486
        %v488 = vpop.xlane.xlu0 %487
        %v490 = vlaneseq
        %v491 = vshrl.u32 %v490, 7
        %v492 = vsub.s32 0, %v491
        %v493 = vrot.slane %v488, %v492
        %v494 = vlaneseq
        %v495 = vshrl.u32 %v494, 7
        %v496 = vsub.s32 1, %v495
        %v497 = vrot.slane %v488, %v496
        %v498 = vlaneseq
        %v499 = vshrl.u32 %v498, 7
        %v500 = vsub.s32 2, %v499
        %v501 = vrot.slane %v488, %v500
        %v502 = vlaneseq
        %v503 = vshrl.u32 %v502, 7
        %v504 = vsub.s32 3, %v503
        %v505 = vrot.slane %v488, %v504
        %v506 = vlaneseq
        %v507 = vshrl.u32 %v506, 7
        %v508 = vsub.s32 4, %v507
        %v509 = vrot.slane %v488, %v508
        %v510 = vlaneseq
        %v511 = vshrl.u32 %v510, 7
        %v512 = vsub.s32 5, %v511
        %v513 = vrot.slane %v488, %v512
        %v514 = vlaneseq
        %v515 = vshrl.u32 %v514, 7
        %v516 = vsub.s32 6, %v515
        %v517 = vrot.slane %v488, %v516
        %v518 = vlaneseq
        %v519 = vshrl.u32 %v518, 7
        %v520 = vsub.s32 7, %v519
        %v521 = vrot.slane %v488, %v520
        %v530 = vsub.f32 %v419, %v493
        %v531 = vsub.f32 %v420, %v497
        %v532 = vsub.f32 %v421, %v501
        %v533 = vsub.f32 %v422, %v505
        %v534 = vsub.f32 %v423, %v509
        %v535 = vsub.f32 %v424, %v513
        %v536 = vsub.f32 %v425, %v517
        %v537 = vsub.f32 %v426, %v521
        %v538 = vmul.f32 %v530, 1.442695
        %v539 = vpow.pop %v538
        %v540 = vmul.f32 %v531, 1.442695
        %v541 = vpow.pop %v540
        %v542 = vmul.f32 %v532, 1.442695
        %v543 = vpow.pop %v542
        %v544 = vmul.f32 %v533, 1.442695
        %v545 = vpow.pop %v544
        %v546 = vmul.f32 %v534, 1.442695
        %v547 = vpow.pop %v546
        %v548 = vmul.f32 %v535, 1.442695
        %v549 = vpow.pop %v548
        %v550 = vmul.f32 %v536, 1.442695
        %v551 = vpow.pop %v550
        %v552 = vmul.f32 %v537, 1.442695
        %v553 = vpow.pop %v552
        %562 = vset.pattern.permute.xlu0 0
        %563 = vperm.xlu0 %562, %v539
        %v564 = vpop.permute.xlu0 %563
        %565 = vset.pattern.permute.xlu0 0
        %566 = vperm.xlu0 %565, %v541
        %v567 = vpop.permute.xlu0 %566
        %568 = vset.pattern.permute.xlu0 0
        %569 = vperm.xlu0 %568, %v543
        %v570 = vpop.permute.xlu0 %569
        %571 = vset.pattern.permute.xlu0 0
        %572 = vperm.xlu0 %571, %v545
        %v573 = vpop.permute.xlu0 %572
        %574 = vset.pattern.permute.xlu0 0
        %575 = vperm.xlu0 %574, %v547
        %v576 = vpop.permute.xlu0 %575
        %577 = vset.pattern.permute.xlu0 0
        %578 = vperm.xlu0 %577, %v549
        %v579 = vpop.permute.xlu0 %578
        %580 = vset.pattern.permute.xlu0 0
        %581 = vperm.xlu0 %580, %v551
        %v582 = vpop.permute.xlu0 %581
        %583 = vset.pattern.permute.xlu0 0
        %584 = vperm.xlu0 %583, %v553
        %v585 = vpop.permute.xlu0 %584
        %v586 = vlaneseq
        %v587 = vshrl.u32 %v586, 7
        %v588 = vsub.s32 %v437, %v587
        %v589 = vrot.slane %v564, %v588
        %v590 = vlaneseq
        %v591 = vshrl.u32 %v590, 7
        %v592 = vsub.s32 %v437, %v591
        %v593 = vrot.slane %v567, %v592
        %v594 = vlaneseq
        %v595 = vshrl.u32 %v594, 7
        %v596 = vsub.s32 %v437, %v595
        %v597 = vrot.slane %v570, %v596
        %v598 = vlaneseq
        %v599 = vshrl.u32 %v598, 7
        %v600 = vsub.s32 %v437, %v599
        %v601 = vrot.slane %v573, %v600
        %v602 = vlaneseq
        %v603 = vshrl.u32 %v602, 7
        %v604 = vsub.s32 %v437, %v603
        %v605 = vrot.slane %v576, %v604
        %v606 = vlaneseq
        %v607 = vshrl.u32 %v606, 7
        %v608 = vsub.s32 %v437, %v607
        %v609 = vrot.slane %v579, %v608
        %v610 = vlaneseq
        %v611 = vshrl.u32 %v610, 7
        %v612 = vsub.s32 %v437, %v611
        %v613 = vrot.slane %v582, %v612
        %v614 = vlaneseq
        %v615 = vshrl.u32 %v614, 7
        %v616 = vsub.s32 %v437, %v615
        %v617 = vrot.slane %v585, %v616
        %v618 = vsel %vm470, %v593, %v589
        %v619 = vsel %vm472, %v597, %v618
        %v620 = vsel %vm474, %v601, %v619
        %v621 = vsel %vm476, %v605, %v620
        %v622 = vsel %vm478, %v609, %v621
        %v623 = vsel %vm480, %v613, %v622
        %v624 = vsel %vm482, %v617, %v623
        %v626 = vsel %vm485, %v624, 0.0
        %627 = vadd.xlane.f32.xlu0 %v626
        %v628 = vpop.xlane.xlu0 %627
        %v629 = vlog2.pop %v628
        %v630 = vmul.f32 %v629, 0.6931472
        %v631 = vadd.f32 %v630, %v488
        %632 = vset.pattern.permute.xlu0 0
        %633 = vperm.xlu0 %632, %v427
        %v634 = vpop.permute.xlu0 %633
        %vm635 = vcmp.eq.s32.totalorder %v437, %v634
        %v636 = vsel %vm635, %v483, 0.0
        %v637 = vsel %vm485, %v636, 0.0
        %638 = vadd.xlane.f32.xlu0 %v637
        %v639 = vpop.xlane.xlu0 %638
        %v640 = vsub.f32 %v631, %v639
        %vm641 = vcmask 7168
        %642 = vst.msk [vmem:[%s223] sm:$0xff] %vm641, %v640
        %p643 = scmp.lt.s32.totalorder %s17, 1
        %s644 = scalar_select %p643, %s17, 1
        %s645 = smul.addr %s644, 8
        %s646 = scalar_lea.vmem %s3, %s645
        // Predicated region
        $region37: #{tpu_custom_call.1} parent=31 // pred_check
          %p647 = pneg %p113
        $region38: #{tpu_custom_call.1} parent=31 // pred_check_branch
          %649 = sbr.rel (%p647) target = $region40
        $region39: #{tpu_custom_call.1} parent=31 // pred_region
          _
        $region40: #{tpu_custom_call.1} parent=31 // pred_fallthru
          _
      $region32: #{tpu_custom_call.1} parent=5 // pred_fallthru
        _
      %p650 = scmp.le.s32.totalorder 2, %s12
      // Predicated region
      $region41: #{tpu_custom_call.1} parent=5 // pred_check
        %p651 = pneg %p650
      $region42: #{tpu_custom_call.1} parent=5 // pred_check_branch
        %653 = sbr.rel (%p651) target = $region44
      $region43: #{tpu_custom_call.1} parent=5 // pred_region
        %s654 = ssub.s32 %s12, 2
        // Predicated region
        $region45: #{tpu_custom_call.1} parent=43 // pred_check
          %p655 = pneg %p119
        $region46: #{tpu_custom_call.1} parent=43 // pred_check_branch
          %657 = sbr.rel (%p655) target = $region48
        $region47: #{tpu_custom_call.1} parent=43 // pred_region
          %p658 = scmp.lt.s32.totalorder %s18, 1
          %s659 = scalar_select %p658, %s18, 1
          %s660 = smul.addr %s659, 8
          %s661 = scalar_lea.vmem %s3, %s660
        $region48: #{tpu_custom_call.1} parent=43 // pred_fallthru
          _
      $region44: #{tpu_custom_call.1} parent=5 // pred_fallthru
        _
    $region6: #{tpu_custom_call.1} parent=1 // loop_footer
      %s16 = sadd.s32 1, %s12
    $region7: #{tpu_custom_call.1} parent=1 // loop_footer_branch
      %11 = sbr.rel target = $region3
    $region8: #{tpu_custom_call.1} parent=1 // loop_exit
      _
    %662 = vsyncpa [#allocation3], 1
    %s663 = scalar_lea.sflag [#allocation3], 1
    %664 = vsyncpa %s663, 1

</llo_original>
